<compile_context>
chip_gen: v7x
topology: tpu7x:2x2x1
jax: 0.10.0
libtpu: 0.0.40
codegen_flags: <defaults>
</compile_context>

<pallas_src>
import functools

import jax
import jax.numpy as jnp
from jax.experimental import pallas as pl
from jax.experimental.pallas import tpu as pltpu


LANES = 128
TILE_ROWS = 512           # (512, 128) f32 block = 256 KiB  (~85% HBM roofline)


# ---------------------------------------------------------------------------
# Fused kernel: sum(z*z) over the z stream and sum(x) over the log_s stream.
# Grid axis 0 walks z blocks first (i < nbz), then log_s blocks.
# ---------------------------------------------------------------------------
def _fused_loss_kernel(nbz, rows_z, rows_s, tile_z, tile_s,   # statics
                       z_ref, s_ref,                          # input blocks
                       sumsq_ref, sums_ref,                   # (1,1) SMEM outs
                       acc_sq_ref, acc_s_ref):                # (1,128) VMEM acc
    i = pl.program_id(0)
    n = pl.num_programs(0)

    @pl.when(i == 0)
    def _():
        acc_sq_ref[...] = jnp.zeros_like(acc_sq_ref)
        acc_s_ref[...] = jnp.zeros_like(acc_s_ref)

    is_z = i < nbz

    @pl.when(is_z)
    def _():
        x = z_ref[...].astype(jnp.float32)
        valid = rows_z - i * tile_z                 # rows valid in this block
        rid = jax.lax.broadcasted_iota(jnp.int32, x.shape, 0)
        x = jnp.where(rid < valid, x, 0.0)          # mask ragged tail exactly
        acc_sq_ref[...] += jnp.sum(x * x, axis=0, keepdims=True)

    @pl.when(jnp.logical_not(is_z))
    def _():
        x = s_ref[...].astype(jnp.float32)
        valid = rows_s - (i - nbz) * tile_s
        rid = jax.lax.broadcasted_iota(jnp.int32, x.shape, 0)
        x = jnp.where(rid < valid, x, 0.0)
        acc_s_ref[...] += jnp.sum(x, axis=0, keepdims=True)

    @pl.when(i == n - 1)                            # single final lane reduce
    def _():
        sumsq_ref[0, 0] = jnp.sum(acc_sq_ref[...])
        sums_ref[0, 0] = jnp.sum(acc_s_ref[...])


# ---------------------------------------------------------------------------
# Wrapper helpers.
# ---------------------------------------------------------------------------
def _lane_matrix(x):
    """(rows, 128) lane-dense view of x.

    Zero-copy (bitcast reshape of a contiguous buffer) whenever x.size is a
    multiple of 128; otherwise only this tensor is zero-padded (exact for both
    sum and sum-of-squares)."""
    flat = x.reshape(-1)
    rem = (-flat.shape[0]) % LANES
    if rem:
        flat = jnp.concatenate([flat, jnp.zeros((rem,), flat.dtype)])
    return flat.reshape(-1, LANES)


def _lane_matrix_concat(tensors):
    """Concatenate raveled tensors (common dtype among *themselves* only, so a
    bf16 log_s list stays bf16 in HBM) into a (rows, 128) slab."""
    dtype = jnp.result_type(*[t.dtype for t in tensors])
    flat = jnp.concatenate([jnp.ravel(t).astype(dtype) for t in tensors])
    rem = (-flat.shape[0]) % LANES
    if rem:
        flat = jnp.concatenate([flat, jnp.zeros((rem,), dtype)])
    return flat.reshape(-1, LANES)


def _fused_sums(z, log_s_list):
    """Returns (sum(z*z), sum over all log_s) with a single pallas_call."""
    log_s_list = list(log_s_list)
    if log_s_list:
        s2d = _lane_matrix_concat(log_s_list)
    else:
        s2d = jnp.zeros((1, LANES), jnp.float32)    # contributes exactly 0

    z2d = _lane_matrix(z)                           # streamed, no HBM copy

    rows_z, rows_s = z2d.shape[0], s2d.shape[0]
    tile_z = min(TILE_ROWS, rows_z)                 # full-dim block if small
    tile_s = min(TILE_ROWS, rows_s)
    nbz = pl.cdiv(rows_z, tile_z)
    nbs = pl.cdiv(rows_s, tile_s)

    kernel = functools.partial(_fused_loss_kernel,
                               nbz, rows_z, rows_s, tile_z, tile_s)

    # Clamped index maps: the inactive input's block index stays pinned, so
    # Pallas only re-DMAs the input that is actually being consumed.
    z_spec = pl.BlockSpec((tile_z, LANES),
                          lambda i: (jnp.minimum(i, nbz - 1), 0))
    s_spec = pl.BlockSpec((tile_s, LANES),
                          lambda i: (jnp.clip(i - nbz, 0, nbs - 1), 0))

    sum_sq, log_s_sum = pl.pallas_call(
        kernel,
        out_shape=(jax.ShapeDtypeStruct((1, 1), jnp.float32),
                   jax.ShapeDtypeStruct((1, 1), jnp.float32)),
        grid=(nbz + nbs,),
        in_specs=[z_spec, s_spec],
        out_specs=(
            pl.BlockSpec((1, 1), lambda i: (0, 0),
                         memory_space=pltpu.MemorySpace.SMEM),
            pl.BlockSpec((1, 1), lambda i: (0, 0),
                         memory_space=pltpu.MemorySpace.SMEM),
        ),
        scratch_shapes=[
            pltpu.VMEM((1, LANES), jnp.float32),
            pltpu.VMEM((1, LANES), jnp.float32),
        ],
        compiler_params=pltpu.CompilerParams(
            dimension_semantics=("arbitrary",)),
    )(z2d, s2d)

    return sum_sq[0, 0], log_s_sum[0, 0]


# ---------------------------------------------------------------------------
# WaveGlowLoss forward (matches the PyTorch module exactly).
# ---------------------------------------------------------------------------
def waveglow_loss(y_pred, sigma=1.0):
    z, log_s_list, log_det_W_list = y_pred

    sum_sq, log_s_total = _fused_sums(z, log_s_list)

    log_det_W_total = jnp.float32(0.0)
    for w in log_det_W_list:
        log_det_W_total = log_det_W_total + jnp.asarray(w, jnp.float32)

    loss = sum_sq / (2.0 * sigma * sigma) - log_s_total - log_det_W_total
    return loss / (z.shape[0] * z.shape[1] * z.shape[2])


# ---------------------------------------------------------------------------
# Self-test.
# ---------------------------------------------------------------------------
def _reference(z, log_s_list, log_det_W_list, sigma):
    ref = jnp.sum(z.astype(jnp.float32) ** 2) / (2.0 * sigma * sigma)
    for ls in log_s_list:
        ref = ref - jnp.sum(ls.astype(jnp.float32))
    for w in log_det_W_list:
        ref = ref - jnp.asarray(w, jnp.float32)
    return ref / (z.shape[0] * z.shape[1] * z.shape[2])


if __name__ == "__main__":
    key = jax.random.PRNGKey(0)
    kz, k1, k2, kd = jax.random.split(key, 4)
    sigma = 1.0

    # --- small canonical case: z (batch, channels, time) ---
    B, C, T = 2, 8, 128
    z = jax.random.normal(kz, (B, C, T), dtype=jnp.float32)
    log_s_list = [
        0.1 * jax.random.normal(k1, (B, C // 2, T), dtype=jnp.float32),
        0.1 * jax.random.normal(k2, (B, C // 2, T), dtype=jnp.float32),
    ]
    log_det_W_list = list(jax.random.normal(kd, (2,), dtype=jnp.float32))

    out = waveglow_loss((z, log_s_list, log_det_W_list), sigma=sigma)
    out = jax.block_until_ready(out)
    ref = _reference(z, log_s_list, log_det_W_list, sigma)
    assert jnp.allclose(out, ref, rtol=1e-5, atol=1e-5), (out, ref)

    # --- ragged case: exercises multi-block streaming + masked tail blocks ---
    B2, C2, T2 = 2, 8, 4167            # 66672 elems: not a multiple of 128
    z2 = jax.random.normal(kz, (B2, C2, T2), dtype=jnp.float32)
    log_s_list2 = [
        0.1 * jax.random.normal(k1, (B2, C2 // 2, T2), dtype=jnp.float32),
        0.1 * jax.random.normal(k2, (B2, C2 // 2, T2), dtype=jnp.float32),
    ]
    out2 = waveglow_loss((z2, log_s_list2, log_det_W_list), sigma=sigma)
    out2 = jax.block_until_ready(out2)
    ref2 = _reference(z2, log_s_list2, log_det_W_list, sigma)
    assert jnp.allclose(out2, ref2, rtol=1e-5, atol=1e-5), (out2, ref2)

    print("KERNEL_OK")
</pallas_src>

<mosaic_0001>
module attributes {stable_mosaic.version = 11 : i64} {
  func.func @_fused_loss_kernel(%arg0: i32, %arg1: memref<16x128xf32, #tpu.memory_space<vmem>>, %arg2: memref<16x128xf32, #tpu.memory_space<vmem>>, %arg3: memref<1x1xf32, #tpu.memory_space<smem>>, %arg4: memref<1x1xf32, #tpu.memory_space<smem>>, %arg5: memref<1x128xf32, #tpu.memory_space<vmem>>, %arg6: memref<1x128xf32, #tpu.memory_space<vmem>>) attributes {dimension_semantics = [#tpu.dimension_semantics<arbitrary>], iteration_bounds = array<i64: 2>, scalar_prefetch = 0 : i64, scratch_operands = 2 : i64, tpu.core_type = #tpu.core_type<tc>, window_params = [{transform_indices = @transform_0, window_bounds = array<i64: 16, 128>}, {transform_indices = @transform_1, window_bounds = array<i64: 16, 128>}, {transform_indices = @transform_2, window_bounds = array<i64: 1, 1>}, {transform_indices = @transform_3, window_bounds = array<i64: 1, 1>}]} {
    %c0_i32 = arith.constant 0 : i32
    %0 = arith.cmpi eq, %arg0, %c0_i32 : i32
    %1 = arith.extui %0 : i1 to i32
    %c0_i32_0 = arith.constant 0 : i32
    %2 = arith.cmpi ne, %1, %c0_i32_0 : i32
    scf.if %2 {
      %cst = arith.constant 0.000000e+00 : f32
      %12 = vector.broadcast %cst : f32 to vector<1x128xf32>
      %c0 = arith.constant 0 : index
      %c0_5 = arith.constant 0 : index
      %13 = vector.load %arg5[%c0, %c0_5] : memref<1x128xf32, #tpu.memory_space<vmem>>, vector<1x128xf32>
      tpu.vector_store %arg5[%c0, %c0_5], %12 {strides = array<i32>} : memref<1x128xf32, #tpu.memory_space<vmem>>, vector<1x128xf32>,
      %cst_6 = arith.constant 0.000000e+00 : f32
      %14 = vector.broadcast %cst_6 : f32 to vector<1x128xf32>
      %c0_7 = arith.constant 0 : index
      %c0_8 = arith.constant 0 : index
      %15 = vector.load %arg6[%c0_7, %c0_8] : memref<1x128xf32, #tpu.memory_space<vmem>>, vector<1x128xf32>
      tpu.vector_store %arg6[%c0_7, %c0_8], %14 {strides = array<i32>} : memref<1x128xf32, #tpu.memory_space<vmem>>, vector<1x128xf32>,
    } else {
    }
    %c1_i32 = arith.constant 1 : i32
    %3 = arith.cmpi slt, %arg0, %c1_i32 : i32
    %4 = arith.extui %3 : i1 to i32
    %c0_i32_1 = arith.constant 0 : i32
    %5 = arith.cmpi ne, %4, %c0_i32_1 : i32
    scf.if %5 {
      %c0 = arith.constant 0 : index
      %c0_5 = arith.constant 0 : index
      %12 = vector.load %arg1[%c0, %c0_5] : memref<16x128xf32, #tpu.memory_space<vmem>>, vector<16x128xf32>
      %c16_i32 = arith.constant 16 : i32
      %13 = arith.muli %arg0, %c16_i32 : i32
      %c16_i32_6 = arith.constant 16 : i32
      %14 = arith.subi %c16_i32_6, %13 : i32
      %15 = tpu.iota {dimensions = array<i32: 0>} : vector<16x128xi32>
      %16 = vector.broadcast %14 : i32 to vector<16x128xi32>
      %17 = arith.cmpi slt, %15, %16 : vector<16x128xi32>
      %cst = arith.constant 0.000000e+00 : f32
      %18 = vector.broadcast %cst : f32 to vector<16x128xf32>
      %19 = arith.select %17, %12, %18 : vector<16x128xi1>, vector<16x128xf32>
      %c0_7 = arith.constant 0 : index
      %c0_8 = arith.constant 0 : index
      %20 = vector.load %arg5[%c0_7, %c0_8] : memref<1x128xf32, #tpu.memory_space<vmem>>, vector<1x128xf32>
      %21 = arith.mulf %19, %19 : vector<16x128xf32>
      %cst_9 = arith.constant dense<0.000000e+00> : vector<128xf32>
      %22 = vector.multi_reduction <add>, %21, %cst_9 [0] : vector<16x128xf32> to vector<128xf32>
      %23 = vector.shape_cast %22 : vector<128xf32> to vector<1x128xf32>
      %24 = arith.addf %20, %23 : vector<1x128xf32>
      %c0_10 = arith.constant 0 : index
      %c0_11 = arith.constant 0 : index
      %25 = vector.load %arg5[%c0_10, %c0_11] : memref<1x128xf32, #tpu.memory_space<vmem>>, vector<1x128xf32>
      tpu.vector_store %arg5[%c0_10, %c0_11], %24 {strides = array<i32>} : memref<1x128xf32, #tpu.memory_space<vmem>>, vector<1x128xf32>,
    } else {
    }
    %true = arith.constant true
    %6 = arith.xori %3, %true : i1
    %7 = arith.extui %6 : i1 to i32
    %c0_i32_2 = arith.constant 0 : i32
    %8 = arith.cmpi ne, %7, %c0_i32_2 : i32
    scf.if %8 {
      %c0 = arith.constant 0 : index
      %c0_5 = arith.constant 0 : index
      %12 = vector.load %arg2[%c0, %c0_5] : memref<16x128xf32, #tpu.memory_space<vmem>>, vector<16x128xf32>
      %c1_i32_6 = arith.constant 1 : i32
      %13 = arith.subi %arg0, %c1_i32_6 : i32
      %c16_i32 = arith.constant 16 : i32
      %14 = arith.muli %13, %c16_i32 : i32
      %c16_i32_7 = arith.constant 16 : i32
      %15 = arith.subi %c16_i32_7, %14 : i32
      %16 = tpu.iota {dimensions = array<i32: 0>} : vector<16x128xi32>
      %17 = vector.broadcast %15 : i32 to vector<16x128xi32>
      %18 = arith.cmpi slt, %16, %17 : vector<16x128xi32>
      %cst = arith.constant 0.000000e+00 : f32
      %19 = vector.broadcast %cst : f32 to vector<16x128xf32>
      %20 = arith.select %18, %12, %19 : vector<16x128xi1>, vector<16x128xf32>
      %c0_8 = arith.constant 0 : index
      %c0_9 = arith.constant 0 : index
      %21 = vector.load %arg6[%c0_8, %c0_9] : memref<1x128xf32, #tpu.memory_space<vmem>>, vector<1x128xf32>
      %cst_10 = arith.constant dense<0.000000e+00> : vector<128xf32>
      %22 = vector.multi_reduction <add>, %20, %cst_10 [0] : vector<16x128xf32> to vector<128xf32>
      %23 = vector.shape_cast %22 : vector<128xf32> to vector<1x128xf32>
      %24 = arith.addf %21, %23 : vector<1x128xf32>
      %c0_11 = arith.constant 0 : index
      %c0_12 = arith.constant 0 : index
      %25 = vector.load %arg6[%c0_11, %c0_12] : memref<1x128xf32, #tpu.memory_space<vmem>>, vector<1x128xf32>
      tpu.vector_store %arg6[%c0_11, %c0_12], %24 {strides = array<i32>} : memref<1x128xf32, #tpu.memory_space<vmem>>, vector<1x128xf32>,
    } else {
    }
    %c1_i32_3 = arith.constant 1 : i32
    %9 = arith.cmpi eq, %arg0, %c1_i32_3 : i32
    %10 = arith.extui %9 : i1 to i32
    %c0_i32_4 = arith.constant 0 : i32
    %11 = arith.cmpi ne, %10, %c0_i32_4 : i32
    scf.if %11 {
      %c0 = arith.constant 0 : index
      %c0_5 = arith.constant 0 : index
      %12 = vector.load %arg5[%c0, %c0_5] : memref<1x128xf32, #tpu.memory_space<vmem>>, vector<1x128xf32>
      %13 = vector.shape_cast %12 : vector<1x128xf32> to vector<1x1x128xf32>
      %cst = arith.constant dense<0.000000e+00> : vector<1xf32>
      %14 = vector.multi_reduction <add>, %13, %cst [1, 2] : vector<1x1x128xf32> to vector<1xf32>
      %15 = vector.shape_cast %14 : vector<1xf32> to vector<1x1x1xf32>
      %16 = vector.extract %15[0, 0, 0] : f32 from vector<1x1x1xf32>
      %c0_6 = arith.constant 0 : index
      %c0_7 = arith.constant 0 : index
      %17 = memref.load %arg3[%c0_6, %c0_7] : memref<1x1xf32, #tpu.memory_space<smem>>
      memref.store %16, %arg3[%c0_6, %c0_7] : memref<1x1xf32, #tpu.memory_space<smem>>
      %c0_8 = arith.constant 0 : index
      %c0_9 = arith.constant 0 : index
      %18 = vector.load %arg6[%c0_8, %c0_9] : memref<1x128xf32, #tpu.memory_space<vmem>>, vector<1x128xf32>
      %19 = vector.shape_cast %18 : vector<1x128xf32> to vector<1x1x128xf32>
      %cst_10 = arith.constant dense<0.000000e+00> : vector<1xf32>
      %20 = vector.multi_reduction <add>, %19, %cst_10 [1, 2] : vector<1x1x128xf32> to vector<1xf32>
      %21 = vector.shape_cast %20 : vector<1xf32> to vector<1x1x1xf32>
      %22 = vector.extract %21[0, 0, 0] : f32 from vector<1x1x1xf32>
      %c0_11 = arith.constant 0 : index
      %c0_12 = arith.constant 0 : index
      %23 = memref.load %arg4[%c0_11, %c0_12] : memref<1x1xf32, #tpu.memory_space<smem>>
      memref.store %22, %arg4[%c0_11, %c0_12] : memref<1x1xf32, #tpu.memory_space<smem>>
    } else {
    }
    return
  }
  func.func @transform_0(%arg0: i32) -> (i32, i32) {
    %c0_i32 = arith.constant 0 : i32
    %0 = arith.minsi %arg0, %c0_i32 : i32
    %c0_i32_0 = arith.constant 0 : i32
    %c0_i32_1 = arith.constant 0 : i32
    return %0, %c0_i32_0 : i32, i32
  }
  func.func @transform_1(%arg0: i32) -> (i32, i32) {
    %c1_i32 = arith.constant 1 : i32
    %0 = arith.subi %arg0, %c1_i32 : i32
    %c0_i32 = arith.constant 0 : i32
    %c0_i32_0 = arith.constant 0 : i32
    %1 = arith.maxsi %c0_i32, %0 : i32
    %2 = arith.minsi %c0_i32_0, %1 : i32
    %c0_i32_1 = arith.constant 0 : i32
    %c0_i32_2 = arith.constant 0 : i32
    return %2, %c0_i32_1 : i32, i32
  }
  func.func @transform_2(%arg0: i32) -> (i32, i32) {
    %c0_i32 = arith.constant 0 : i32
    %c0_i32_0 = arith.constant 0 : i32
    %c0_i32_1 = arith.constant 0 : i32
    return %c0_i32, %c0_i32_0 : i32, i32
  }
  func.func @transform_3(%arg0: i32) -> (i32, i32) {
    %c0_i32 = arith.constant 0 : i32
    %c0_i32_0 = arith.constant 0 : i32
    %c0_i32_1 = arith.constant 0 : i32
    return %c0_i32, %c0_i32_0 : i32, i32
  }
}

</mosaic_0001>

<llo_original>
// kernel: tpu_custom_call.1
$region0: #{tpu_custom_call.1}
  #allocation0 [shape = 'u32[]', space=smem, size = 0x4, offset = 0x4, fixed_abs, tag = 'smem constant byte address 0x4 - core index']
  #allocation1 [shape = 'u32[144,128]{1,0:T(1,128)}', space=vmem, size = 0x12000, scoped, tag = 'internal scratch']
  #allocation2 [shape = 'f32[1,128]{1,0:T(1,128)}', space=vmem, size = 0x200, scoped, tag = 'scratch operand']
  #allocation3 [shape = 'f32[1,128]{1,0:T(1,128)}', space=vmem, size = 0x200, scoped, tag = 'scratch operand']
  %s0 = inlined_call_operand.hbm [shape: f32[16,128], index: 0, kind: input, shape index: {}]
  %s1 = inlined_call_operand.hbm [shape: f32[16,128], index: 1, kind: input, shape index: {}]
  %s2 = inlined_call_operand.hbm [shape: f32[1,1], index: 2, kind: output, shape index: {0}]
  %s3 = inlined_call_operand.hbm [shape: f32[1,1], index: 3, kind: output, shape index: {1}]
  %4 = xla_tuple %s2, %s3
  %s5 = sld [smem:[#allocation0]]
  $region73: #{tpu_custom_call.1} parent=0
    _
  %s7 = ssub.s32 1, %s5
  %s8 = scalar_select 0, %s7, %s5
  $region1: #{tpu_custom_call.1} parent=0
    #allocation4 [shape = 'u8[16384]{0}', space=vmem, size = 0x4000, scoped, tag = 'input window, operand 0']
    #allocation5 [shape = 's32[2]{0}', space=sflag, size = 0x8, scoped, tag = 'scoped memory for tpu_custom_call.1']
    #allocation6 [shape = 's32[2]{0}', space=sflag, size = 0x8, scoped, tag = 'scoped memory for tpu_custom_call.1']
    #allocation7 [shape = 'u8[16384]{0}', space=vmem, size = 0x4000, scoped, tag = 'input window, operand 1']
    #allocation8 [shape = 's32[2]{0}', space=sflag, size = 0x8, scoped, tag = 'scoped memory for tpu_custom_call.1']
    #allocation9 [shape = 'u8[512]{0}', space=smem, size = 0x200, scoped, tag = 'output window, operand 0, single buffered']
    #allocation10 [shape = 'u8[512]{0}', space=smem, size = 0x200, scoped, tag = 'output window, operand 1, single buffered']
    #allocation11 [shape = 's32[1]{0}', space=sflag, size = 0x4, scoped, tag = 'scoped memory for tpu_custom_call.1']
    %9 = vsyncpa [#allocation5], 0
    %s10 = scalar_lea.sflag [#allocation5], 1
    %11 = vsyncpa %s10, 0
    %12 = vsyncpa [#allocation8], 0
    %s13 = scalar_lea.sflag [#allocation8], 1
    %14 = vsyncpa %s13, 0
    %15 = vsyncpa [#allocation6], 0
    %16 = vsyncpa [#allocation11], 0
    loop: start=0, step=1, limit=4
    $region2: #{tpu_custom_call.1} parent=1 // loop_pre_header
      _
    $region3: #{tpu_custom_call.1} parent=1 // loop_header
      %s18 = sphi 0, %s22
      %p19 = scmp.ge.s32.totalorder %s18, 4
      %s32 = sphi 0, %s34
      %s35 = sphi 0, %s32
      %s36 = sphi 0, %s35
      %s52 = sphi 0, %s36
      %s68 = sphi 0, %s70
      %s71 = sphi 0, %s68
      %s72 = sphi 0, %s71
      %s88 = sphi 0, %s72
      %s92 = sphi 0, %s92
      %s94 = sphi 0, %s92
      %s95 = sphi 0, %s94
      %s109 = sphi 0, %s95
      %s113 = sphi 0, %s113
      %s115 = sphi 0, %s113
      %s116 = sphi 0, %s115
      %s130 = sphi 0, %s116
    $region4: #{tpu_custom_call.1} parent=1 // loop_header_branch
      %21 = sbr.rel (%p19) target = $region8
    $region5: #{tpu_custom_call.1} parent=1 // loop_body
      %s23 = ssub.s32 %s18, 1
      %s24 = ssub.s32 %s18, 2
      %s25 = sadd.s32 %s18, 1
      %p26 = scmp.lt.s32.totalorder %s18, 0
      %s27 = scalar_select %p26, %s18, 0
      %p28 = scmp.lt.s32.totalorder %s25, 0
      %s29 = scalar_select %p28, %s25, 0
      %s30 = ssub.s32 %s27, %s29
      %p31 = scmp.eq.s32.totalorder %s30, 0
      %s33 = sadd.s32 %s32, 1
      %s34 = scalar_select %p31, %s32, %s33
      %p37 = pneg %p31
      %p38 = scmp.eq.s32.totalorder %s18, 1
      %p39 = por %p37, %p38
      %p40 = scmp.ne.s32.totalorder %s32, %s35
      %p41 = scmp.eq.s32.totalorder %s18, 0
      %p42 = por %p40, %p41
      %p43 = scmp.ne.s32.totalorder %s32, %s35
      %p44 = scmp.eq.s32.totalorder %s23, 1
      %p45 = por %p43, %p44
      %p46 = scmp.ne.s32.totalorder %s35, %s36
      %p47 = scmp.eq.s32.totalorder %s23, 0
      %p48 = por %p46, %p47
      %p49 = scmp.ne.s32.totalorder %s35, %s36
      %p50 = scmp.eq.s32.totalorder %s24, 1
      %p51 = por %p49, %p50
      %p53 = scmp.ne.s32.totalorder %s36, %s52
      %p54 = scmp.eq.s32.totalorder %s24, 0
      %p55 = por %p53, %p54
      %s56 = ssub.s32 %s18, 1
      %p57 = scmp.gt.s32.totalorder %s56, 0
      %s58 = scalar_select %p57, %s56, 0
      %p59 = scmp.lt.s32.totalorder %s58, 0
      %s60 = scalar_select %p59, %s58, 0
      %s61 = ssub.s32 %s25, 1
      %p62 = scmp.gt.s32.totalorder %s61, 0
      %s63 = scalar_select %p62, %s61, 0
      %p64 = scmp.lt.s32.totalorder %s63, 0
      %s65 = scalar_select %p64, %s63, 0
      %s66 = ssub.s32 %s60, %s65
      %p67 = scmp.eq.s32.totalorder %s66, 0
      %s69 = sadd.s32 %s68, 1
      %s70 = scalar_select %p67, %s68, %s69
      %p73 = pneg %p67
      %p74 = scmp.eq.s32.totalorder %s18, 1
      %p75 = por %p73, %p74
      %p76 = scmp.ne.s32.totalorder %s68, %s71
      %p77 = scmp.eq.s32.totalorder %s18, 0
      %p78 = por %p76, %p77
      %p79 = scmp.ne.s32.totalorder %s68, %s71
      %p80 = scmp.eq.s32.totalorder %s23, 1
      %p81 = por %p79, %p80
      %p82 = scmp.ne.s32.totalorder %s71, %s72
      %p83 = scmp.eq.s32.totalorder %s23, 0
      %p84 = por %p82, %p83
      %p85 = scmp.ne.s32.totalorder %s71, %s72
      %p86 = scmp.eq.s32.totalorder %s24, 1
      %p87 = por %p85, %p86
      %p89 = scmp.ne.s32.totalorder %s72, %s88
      %p90 = scmp.eq.s32.totalorder %s24, 0
      %p91 = por %p89, %p90
      %s93 = sadd.s32 %s92, 1
      %p96 = scmp.eq.s32.totalorder %s18, 1
      %p97 = scmp.ne.s32.totalorder %s92, %s94
      %p98 = scmp.eq.s32.totalorder %s18, 0
      %p99 = por %p97, %p98
      %p100 = scmp.ne.s32.totalorder %s92, %s94
      %p101 = scmp.eq.s32.totalorder %s23, 1
      %p102 = por %p100, %p101
      %p103 = scmp.ne.s32.totalorder %s94, %s95
      %p104 = scmp.eq.s32.totalorder %s23, 0
      %p105 = por %p103, %p104
      %p106 = scmp.ne.s32.totalorder %s94, %s95
      %p107 = scmp.eq.s32.totalorder %s24, 1
      %p108 = por %p106, %p107
      %p110 = scmp.ne.s32.totalorder %s95, %s109
      %p111 = scmp.eq.s32.totalorder %s24, 0
      %p112 = por %p110, %p111
      %s114 = sadd.s32 %s113, 1
      %p117 = scmp.eq.s32.totalorder %s18, 1
      %p118 = scmp.ne.s32.totalorder %s113, %s115
      %p119 = scmp.eq.s32.totalorder %s18, 0
      %p120 = por %p118, %p119
      %p121 = scmp.ne.s32.totalorder %s113, %s115
      %p122 = scmp.eq.s32.totalorder %s23, 1
      %p123 = por %p121, %p122
      %p124 = scmp.ne.s32.totalorder %s115, %s116
      %p125 = scmp.eq.s32.totalorder %s23, 0
      %p126 = por %p124, %p125
      %p127 = scmp.ne.s32.totalorder %s115, %s116
      %p128 = scmp.eq.s32.totalorder %s24, 1
      %p129 = por %p127, %p128
      %p131 = scmp.ne.s32.totalorder %s116, %s130
      %p132 = scmp.eq.s32.totalorder %s24, 0
      %p133 = por %p131, %p132
      %p134 = scmp.le.s32.totalorder 1, %s18
      %p135 = scmp.lt.s32.totalorder %s18, 3
      %p136 = pnand %p134, %p135
      %p137 = pneg %p136
      // Predicated region
      $region9: #{tpu_custom_call.1} parent=5 // pred_check
        _
      $region10: #{tpu_custom_call.1} parent=5 // pred_check_branch
        %139 = sbr.rel (%p136) target = $region12
      $region11: #{tpu_custom_call.1} parent=5 // pred_region
        %s140 = ssub.s32 %s18, 1
      $region12: #{tpu_custom_call.1} parent=5 // pred_fallthru
        _
      %p141 = scmp.lt.s32.totalorder %s18, 2
      // Predicated region
      $region13: #{tpu_custom_call.1} parent=5 // pred_check
        %p142 = pneg %p141
      $region14: #{tpu_custom_call.1} parent=5 // pred_check_branch
        %144 = sbr.rel (%p142) target = $region16
      $region15: #{tpu_custom_call.1} parent=5 // pred_region
        // Predicated region
        $region17: #{tpu_custom_call.1} parent=15 // pred_check
          %p145 = pneg %p42
        $region18: #{tpu_custom_call.1} parent=15 // pred_check_branch
          %147 = sbr.rel (%p145) target = $region20
        $region19: #{tpu_custom_call.1} parent=15 // pred_region
          %s148 = sand.u32 %s32, 1
          %s149 = scalar_lea.sflag [#allocation5], %s148
          %s150 = sand.u32 %s32, 1
          %s151 = smul.addr %s150, 16
          %s152 = scalar_lea.vmem [#allocation4], %s151
          %p153 = scmp.lt.s32.totalorder %s18, 0
          %s154 = scalar_select %p153, %s18, 0
          %s155 = smul.u32 2, %s154
          %s157 = ssub.s32 256, 256
          %158 = vsyncadd %s149, %s157
          %s159 = smul.addr %s155, 128
          %s160 = scalar_lea.hbm %s0, %s159
          %s161 = sshll.u32 %s152, 4
          %s162 = int_to_ptr.vmem [resolvable:$true] %s161
          %167 = dma.hbm_to_vmem [thread:$0]  %s160, 256, %s162, %s149, 128, 128, 8
        $region20: #{tpu_custom_call.1} parent=15 // pred_fallthru
          _
        // Predicated region
        $region21: #{tpu_custom_call.1} parent=15 // pred_check
          %p168 = pneg %p78
        $region22: #{tpu_custom_call.1} parent=15 // pred_check_branch
          %170 = sbr.rel (%p168) target = $region24
        $region23: #{tpu_custom_call.1} parent=15 // pred_region
          %s171 = sand.u32 %s68, 1
          %s172 = scalar_lea.sflag [#allocation8], %s171
          %s173 = sand.u32 %s68, 1
          %s174 = smul.addr %s173, 16
          %s175 = scalar_lea.vmem [#allocation7], %s174
          %s176 = ssub.s32 %s18, 1
          %p177 = scmp.gt.s32.totalorder %s176, 0
          %s178 = scalar_select %p177, %s176, 0
          %p179 = scmp.lt.s32.totalorder %s178, 0
          %s180 = scalar_select %p179, %s178, 0
          %s181 = smul.u32 2, %s180
          %s183 = ssub.s32 256, 256
          %184 = vsyncadd %s172, %s183
          %s185 = smul.addr %s181, 128
          %s186 = scalar_lea.hbm %s1, %s185
          %s187 = sshll.u32 %s175, 4
          %s188 = int_to_ptr.vmem [resolvable:$true] %s187
          %193 = dma.hbm_to_vmem [thread:$0]  %s186, 256, %s188, %s172, 128, 128, 8
        $region24: #{tpu_custom_call.1} parent=15 // pred_fallthru
          _
      $region16: #{tpu_custom_call.1} parent=5 // pred_fallthru
        _
      %p194 = scmp.le.s32.totalorder 1, %s18
      %p195 = scmp.lt.s32.totalorder %s18, 3
      %p196 = pnand %p194, %p195
      %p197 = pneg %p196
      // Predicated region
      $region25: #{tpu_custom_call.1} parent=5 // pred_check
        _
      $region26: #{tpu_custom_call.1} parent=5 // pred_check_branch
        %199 = sbr.rel (%p196) target = $region28
      $region27: #{tpu_custom_call.1} parent=5 // pred_region
        %s200 = ssub.s32 %s18, 1
        %s201 = sand.u32 %s35, 1
        %s202 = scalar_lea.sflag [#allocation5], %s201
        %s203 = sand.u32 %s35, 1
        %s204 = smul.addr %s203, 16
        %s205 = scalar_lea.vmem [#allocation4], %s204
        // Predicated region
        $region29: #{tpu_custom_call.1} parent=27 // pred_check
          %p206 = pneg %p48
        $region30: #{tpu_custom_call.1} parent=27 // pred_check_branch
          %208 = sbr.rel (%p206) target = $region32
        $region31: #{tpu_custom_call.1} parent=27 // pred_region
          %209 = dma.done %s202, 256
        $region32: #{tpu_custom_call.1} parent=27 // pred_fallthru
          _
        %s210 = sand.u32 %s71, 1
        %s211 = scalar_lea.sflag [#allocation8], %s210
        %s212 = sand.u32 %s71, 1
        %s213 = smul.addr %s212, 16
        %s214 = scalar_lea.vmem [#allocation7], %s213
        // Predicated region
        $region33: #{tpu_custom_call.1} parent=27 // pred_check
          %p215 = pneg %p84
        $region34: #{tpu_custom_call.1} parent=27 // pred_check_branch
          %217 = sbr.rel (%p215) target = $region36
        $region35: #{tpu_custom_call.1} parent=27 // pred_region
          %218 = dma.done %s211, 256
        $region36: #{tpu_custom_call.1} parent=27 // pred_fallthru
          _
        %s219 = sand.u32 %s35, 1
        %s220 = scalar_lea.sflag [#allocation5], %s219
        %s221 = sand.u32 %s35, 1
        %s222 = smul.addr %s221, 16
        %s223 = scalar_lea.vmem [#allocation4], %s222
        %p224 = pneg %p48
        %p225 = pneg %p45
        %s226 = sand.u32 %s71, 1
        %s227 = scalar_lea.sflag [#allocation8], %s226
        %s228 = sand.u32 %s71, 1
        %s229 = smul.addr %s228, 16
        %s230 = scalar_lea.vmem [#allocation7], %s229
        %p231 = pneg %p84
        %p232 = pneg %p81
        %p233 = pneg %p105
        %p234 = pneg %p102
        %p235 = pneg %p126
        %p236 = pneg %p123
        %p237 = scmp.lt.s32.totalorder %s23, 0
        %s238 = scalar_select %p237, %s23, 0
        %s239 = smul.u32 2, %s238
        %s240 = ssub.s32 %s23, 1
        %p241 = scmp.gt.s32.totalorder %s240, 0
        %s242 = scalar_select %p241, %s240, 0
        %p243 = scmp.lt.s32.totalorder %s242, 0
        %s244 = scalar_select %p243, %s242, 0
        %s245 = smul.u32 2, %s244
        %p246 = scmp.eq.s32.totalorder %s23, 0
        // Predicated region
        $region37: #{tpu_custom_call.1} parent=27 // pred_check
          %p247 = pneg %p246
        $region38: #{tpu_custom_call.1} parent=27 // pred_check_branch
          %249 = sbr.rel (%p247) target = $region40
        $region39: #{tpu_custom_call.1} parent=27 // pred_region
          %250 = vst [vmem:[#allocation2] sm:$0x1] 0.0
          %251 = vst [vmem:[#allocation3] sm:$0x1] 0.0
        $region40: #{tpu_custom_call.1} parent=27 // pred_fallthru
          _
        %p252 = scmp.lt.s32.totalorder %s23, 1
        // Predicated region
        $region41: #{tpu_custom_call.1} parent=27 // pred_check
          %p253 = pneg %p252
        $region42: #{tpu_custom_call.1} parent=27 // pred_check_branch
          %255 = sbr.rel (%p253) target = $region44
        $region43: #{tpu_custom_call.1} parent=27 // pred_region
          %v256 = vld [vmem:[%s205] sm:$0xff]
          %v257 = vld [vmem:[%s205 + $0x8] sm:$0xff]
          %s258 = smul.u32 %s23, 16
          %s259 = ssub.s32 16, %s258
          %v260 = vlaneseq
          %v261 = vshrl.u32 %v260, 7
          %v262 = vadd.s32 %v261, 8
          %v263 = vstv %s259
          %vm264 = vcmp.lt.s32.totalorder %v261, %v263
          %vm265 = vcmp.lt.s32.totalorder %v262, %v263
          %v266 = vsel %vm264, %v256, 0.0
          %v267 = vsel %vm265, %v257, 0.0
          %v268 = vld [vmem:[#allocation2] sm:$0x1]
          %v269 = vmul.f32 %v266, %v266
          %v270 = vmul.f32 %v267, %v267
          %v271 = vadd.f32 %v269, %v270
          %v272 = vrot.slane %v271, 4
          %v273 = vadd.f32 %v271, %v272
          %v274 = vrot.slane %v273, 2
          %v275 = vadd.f32 %v273, %v274
          %v276 = vrot.slane %v275, 1
          %v277 = vadd.f32 %v275, %v276
          %v278 = vadd.f32 %v268, %v277
          %279 = vst [vmem:[#allocation2] sm:$0x1] %v278
        $region44: #{tpu_custom_call.1} parent=27 // pred_fallthru
          _
        %p280 = scmp.ge.s32.totalorder %s23, 1
        // Predicated region
        $region45: #{tpu_custom_call.1} parent=27 // pred_check
          %p281 = pneg %p280
        $region46: #{tpu_custom_call.1} parent=27 // pred_check_branch
          %283 = sbr.rel (%p281) target = $region48
        $region47: #{tpu_custom_call.1} parent=27 // pred_region
          %v284 = vld [vmem:[%s214] sm:$0xff]
          %v285 = vld [vmem:[%s214 + $0x8] sm:$0xff]
          %s286 = ssub.s32 %s23, 1
          %s287 = smul.u32 %s286, 16
          %s288 = ssub.s32 16, %s287
          %v289 = vlaneseq
          %v290 = vshrl.u32 %v289, 7
          %v291 = vadd.s32 %v290, 8
          %v292 = vstv %s288
          %vm293 = vcmp.lt.s32.totalorder %v290, %v292
          %vm294 = vcmp.lt.s32.totalorder %v291, %v292
          %v295 = vsel %vm293, %v284, 0.0
          %v296 = vsel %vm294, %v285, 0.0
          %v297 = vld [vmem:[#allocation3] sm:$0x1]
          %v298 = vadd.f32 %v295, %v296
          %v299 = vrot.slane %v298, 4
          %v300 = vadd.f32 %v298, %v299
          %v301 = vrot.slane %v300, 2
          %v302 = vadd.f32 %v300, %v301
          %v303 = vrot.slane %v302, 1
          %v304 = vadd.f32 %v302, %v303
          %v305 = vadd.f32 %v297, %v304
          %306 = vst [vmem:[#allocation3] sm:$0x1] %v305
        $region48: #{tpu_custom_call.1} parent=27 // pred_fallthru
          _
        %p307 = scmp.eq.s32.totalorder %s23, 1
        // Predicated region
        $region49: #{tpu_custom_call.1} parent=27 // pred_check
          %p308 = pneg %p307
        $region50: #{tpu_custom_call.1} parent=27 // pred_check_branch
          %310 = sbr.rel (%p308) target = $region52
        $region51: #{tpu_custom_call.1} parent=27 // pred_region
          %v311 = vld [vmem:[#allocation2] sm:$0x1]
          %vm312 = vcmask 1040384
          %v313 = vsel %vm312, %v311, 0.0
          %314 = vadd.xlane.f32.xlu0 %v313
          %v315 = vpop.xlane.xlu0 %314
          %v316 = vrot.slane %v315, 4
          %v317 = vadd.f32 %v315, %v316
          %v318 = vrot.slane %v317, 2
          %v319 = vadd.f32 %v317, %v318
          %v320 = vrot.slane %v319, 1
          %v321 = vadd.f32 %v319, %v320
          %s322 = vtos %v321
          %s323 = scalar_lea.smem [#allocation9], 0
          %324 = sst [smem:[%s323]] %s322
          %v325 = vld [vmem:[#allocation3] sm:$0x1]
          %v326 = vsel %vm312, %v325, 0.0
          %327 = vadd.xlane.f32.xlu0 %v326
          %v328 = vpop.xlane.xlu0 %327
          %v329 = vrot.slane %v328, 4
          %v330 = vadd.f32 %v328, %v329
          %v331 = vrot.slane %v330, 2
          %v332 = vadd.f32 %v330, %v331
          %v333 = vrot.slane %v332, 1
          %v334 = vadd.f32 %v332, %v333
          %s335 = vtos %v334
          %s336 = scalar_lea.smem [#allocation10], 0
          %337 = sst [smem:[%s336]] %s335
        $region52: #{tpu_custom_call.1} parent=27 // pred_fallthru
          _
        // Predicated region
        $region53: #{tpu_custom_call.1} parent=27 // pred_check
          %p338 = pneg %p102
        $region54: #{tpu_custom_call.1} parent=27 // pred_check_branch
          %340 = sbr.rel (%p338) target = $region56
        $region55: #{tpu_custom_call.1} parent=27 // pred_region
          %s342 = ssub.s32 16, 16
          %343 = vsyncadd [#allocation6], %s342
          %346 = dma.smem_to_hbm [#allocation9], 16, %s2, [#allocation6]
        $region56: #{tpu_custom_call.1} parent=27 // pred_fallthru
          _
        // Predicated region
        $region57: #{tpu_custom_call.1} parent=27 // pred_check
          %p347 = pneg %p123
        $region58: #{tpu_custom_call.1} parent=27 // pred_check_branch
          %349 = sbr.rel (%p347) target = $region60
        $region59: #{tpu_custom_call.1} parent=27 // pred_region
          %s351 = ssub.s32 16, 16
          %352 = vsyncadd [#allocation11], %s351
          %355 = dma.smem_to_hbm [#allocation10], 16, %s3, [#allocation11]
        $region60: #{tpu_custom_call.1} parent=27 // pred_fallthru
          _
        // Predicated region
        $region61: #{tpu_custom_call.1} parent=27 // pred_check
          %p356 = pneg %p102
        $region62: #{tpu_custom_call.1} parent=27 // pred_check_branch
          %358 = sbr.rel (%p356) target = $region64
        $region63: #{tpu_custom_call.1} parent=27 // pred_region
          %359 = dma.done [#allocation6], 16
        $region64: #{tpu_custom_call.1} parent=27 // pred_fallthru
          _
        // Predicated region
        $region65: #{tpu_custom_call.1} parent=27 // pred_check
          %p360 = pneg %p123
        $region66: #{tpu_custom_call.1} parent=27 // pred_check_branch
          %362 = sbr.rel (%p360) target = $region68
        $region67: #{tpu_custom_call.1} parent=27 // pred_region
          %363 = dma.done [#allocation11], 16
        $region68: #{tpu_custom_call.1} parent=27 // pred_fallthru
          _
        %364 = sfence
      $region28: #{tpu_custom_call.1} parent=5 // pred_fallthru
        _
      %p365 = scmp.le.s32.totalorder 2, %s18
      // Predicated region
      $region69: #{tpu_custom_call.1} parent=5 // pred_check
        %p366 = pneg %p365
      $region70: #{tpu_custom_call.1} parent=5 // pred_check_branch
        %368 = sbr.rel (%p366) target = $region72
      $region71: #{tpu_custom_call.1} parent=5 // pred_region
        %s369 = ssub.s32 %s18, 2
      $region72: #{tpu_custom_call.1} parent=5 // pred_fallthru
        _
    $region6: #{tpu_custom_call.1} parent=1 // loop_footer
      %s22 = sadd.s32 1, %s18
    $region7: #{tpu_custom_call.1} parent=1 // loop_footer_branch
      %17 = sbr.rel target = $region3
    $region8: #{tpu_custom_call.1} parent=1 // loop_exit
      _
    %370 = vsyncpa [#allocation5], 1
    %s371 = scalar_lea.sflag [#allocation5], 1
    %372 = vsyncpa %s371, 1
    %373 = vsyncpa [#allocation8], 1
    %s374 = scalar_lea.sflag [#allocation8], 1
    %375 = vsyncpa %s374, 1
    %376 = vsyncpa [#allocation6], 1
    %s377 = scalar_lea.sflag [#allocation6], 1
    %378 = vsyncpa %s377, 1
    %379 = vsyncpa [#allocation11], 1

</llo_original>
